<compile_context>
chip_gen: v5e
topology: v5e:2x2
jax: 0.10.0
libtpu: 0.0.40
codegen_flags: <defaults>
</compile_context>

<pallas_src>
import functools

import jax
import jax.numpy as jnp
from jax.experimental import pallas as pl
from jax.experimental.pallas import tpu as pltpu


def _cat_tanh_kernel(x_ref, o_ref, *, cd):
    # x_ref: (tb, CD) in VMEM, o_ref: (tb, 2*CD) in VMEM (lane-dense last dim).
    t = jnp.tanh(x_ref[...])
    # Two static-slice stores of the same vregs -> no doubled tensor in vregs.
    o_ref[:, :cd] = t
    o_ref[:, cd:] = t


def _sublane_multiple(dtype):
    itemsize = jnp.dtype(dtype).itemsize
    if itemsize >= 4:
        return 8
    if itemsize == 2:
        return 16
    return 32


def cat_tanh(x, *, block_budget_bytes=8 * 1024 * 1024):
    B, C, D = x.shape
    CD = C * D
    itemsize = jnp.dtype(x.dtype).itemsize

    # Free wrapper-side flatten of a contiguous array.
    x2 = x.reshape(B, CD)

    # --- VMEM-budgeted batch tile --------------------------------------
    # Per row of a block we hold CD (input) + 2*CD (output) elements; Pallas
    # double-buffers each, so keep the single-buffer block bytes under
    # block_budget_bytes (=> ~2x that live), which fits every generation
    # (v7x 64 MiB physical) with the 32 MiB scoped limit below.
    sub = _sublane_multiple(x.dtype)
    if B <= sub:
        # Tiny batch: single full-array block (block dims == array dims is
        # always legal w.r.t. the (8,128) constraint).
        tb = B
    else:
        bytes_per_row = 3 * CD * itemsize
        rows = max(sub, block_budget_bytes // max(bytes_per_row, 1))
        tb = min(B, 1024, (rows // sub) * sub)
    grid = (pl.cdiv(B, tb),)

    kernel = functools.partial(_cat_tanh_kernel, cd=CD)

    out = pl.pallas_call(
        kernel,
        out_shape=jax.ShapeDtypeStruct((B, 2 * CD), x.dtype),
        grid_spec=pltpu.PrefetchScalarGridSpec(
            num_scalar_prefetch=0,
            grid=grid,
            in_specs=[pl.BlockSpec((tb, CD), lambda i: (i, 0))],
            out_specs=pl.BlockSpec((tb, 2 * CD), lambda i: (i, 0)),
        ),
        compiler_params=pltpu.CompilerParams(
            dimension_semantics=("parallel",),
            vmem_limit_bytes=32 * 1024 * 1024,
        ),
        cost_estimate=pl.CostEstimate(
            flops=0,
            transcendentals=B * CD,
            bytes_accessed=3 * B * CD * itemsize,
        ),
    )(x2)

    # Already in the PyTorch output layout (B, 2*C*D); no trailing reshape.
    return out


if __name__ == "__main__":
    key = jax.random.PRNGKey(0)
    # Shapes consistent with the original module: x = torch.randn((2, 3, 4))
    x = jax.random.normal(key, (2, 3, 4), dtype=jnp.float32)

    z = cat_tanh(x)
    jax.block_until_ready(z)

    # Reference check in plain JAX.
    y_ref = jnp.concatenate((x, x), axis=1)
    z_ref = jnp.tanh(y_ref.reshape(y_ref.shape[0], -1))
    assert z.shape == (2, 24), z.shape
    assert jnp.allclose(z, z_ref, atol=1e-6), "mismatch vs reference"

    print("KERNEL_OK")
</pallas_src>

<mosaic_0001>
module attributes {stable_mosaic.version = 11 : i64} {
  func.func @_cat_tanh_kernel(%arg0: i32, %arg1: memref<2x12xf32, #tpu.memory_space<vmem>>, %arg2: memref<2x24xf32, #tpu.memory_space<vmem>>) attributes {dimension_semantics = [#tpu.dimension_semantics<parallel>], iteration_bounds = array<i64: 1>, scalar_prefetch = 0 : i64, scratch_operands = 0 : i64, tpu.core_type = #tpu.core_type<tc>, window_params = [{transform_indices = @transform_0, window_bounds = array<i64: 2, 12>}, {transform_indices = @transform_1, window_bounds = array<i64: 2, 24>}]} {
    %c0 = arith.constant 0 : index
    %c0_0 = arith.constant 0 : index
    %0 = vector.load %arg1[%c0, %c0_0] : memref<2x12xf32, #tpu.memory_space<vmem>>, vector<2x12xf32>
    %1 = math.tanh %0 : vector<2x12xf32>
    %c0_1 = arith.constant 0 : index
    %c0_2 = arith.constant 0 : index
    %2 = vector.load %arg2[%c0_1, %c0_2] : memref<2x24xf32, #tpu.memory_space<vmem>>, vector<2x12xf32>
    tpu.vector_store %arg2[%c0_1, %c0_2], %1 {strides = array<i32>} : memref<2x24xf32, #tpu.memory_space<vmem>>, vector<2x12xf32>,
    %c0_3 = arith.constant 0 : index
    %c12 = arith.constant 12 : index
    %3 = vector.load %arg2[%c0_3, %c12] : memref<2x24xf32, #tpu.memory_space<vmem>>, vector<2x12xf32>
    tpu.vector_store %arg2[%c0_3, %c12], %1 {strides = array<i32>} : memref<2x24xf32, #tpu.memory_space<vmem>>, vector<2x12xf32>,
    return
  }
  func.func @transform_0(%arg0: i32) -> (i32, i32) {
    %c0_i32 = arith.constant 0 : i32
    %c0_i32_0 = arith.constant 0 : i32
    return %arg0, %c0_i32 : i32, i32
  }
  func.func @transform_1(%arg0: i32) -> (i32, i32) {
    %c0_i32 = arith.constant 0 : i32
    %c0_i32_0 = arith.constant 0 : i32
    return %arg0, %c0_i32 : i32, i32
  }
}

</mosaic_0001>

<llo_original>
// kernel: tpu_custom_call.1
$region0: #{tpu_custom_call.1}
  #allocation0 [shape = 'u32[]', space=smem, size = 0x4, offset = 0x4, fixed_abs, tag = 'smem constant byte address 0x4 - core index']
  #allocation1 [shape = 'u32[72,128]{1,0:T(1,128)}', space=vmem, size = 0x9000, scoped, tag = 'internal scratch']
  %s0 = inlined_call_operand.hbm [shape: f32[2,12], index: 0, kind: input, shape index: {}]
  %s1 = inlined_call_operand.hbm [shape: f32[2,24], index: 1, kind: output, shape index: {}]
  %s2 = sld [smem:[#allocation0]]
  $region18: #{tpu_custom_call.1} parent=0
    _
  %s4 = ssub.s32 1, %s2
  %s5 = scalar_select 0, %s4, %s2
  $region1: #{tpu_custom_call.1} parent=0
    #allocation2 [shape = 'u8[1024]{0}', space=vmem, size = 0x400, scoped, tag = 'input window, operand 0, single buffered']
    #allocation3 [shape = 's32[1]{0}', space=sflag, size = 0x4, scoped, tag = 'scoped memory for tpu_custom_call.1']
    #allocation4 [shape = 's32[1]{0}', space=sflag, size = 0x4, scoped, tag = 'scoped memory for tpu_custom_call.1']
    #allocation5 [shape = 'u8[1024]{0}', space=vmem, size = 0x400, scoped, tag = 'output window, operand 0, single buffered']
    %6 = vsyncpa [#allocation3], 0
    %7 = vsyncpa [#allocation4], 0
    // Predicated region
    $region2: #{tpu_custom_call.1} parent=1 // pred_check
      _
    $region3: #{tpu_custom_call.1} parent=1 // pred_check_branch
      %9 = sbr.rel (0) target = $region5
    $region4: #{tpu_custom_call.1} parent=1 // pred_region
      %11 = vsyncadd [#allocation3], 0
      %s13 = sshll.u32 %s0, 4
      %s14 = int_to_ptr.hbm [resolvable:$true] %s13
      %s15 = sshll.u32 [#allocation2], 4
      %s16 = int_to_ptr.vmem [resolvable:$true] %s15
      %18 = dma.hbm_to_vmem [thread:$0]  %s14, 32, %s16, [#allocation3]
    $region5: #{tpu_custom_call.1} parent=1 // pred_fallthru
      _
    // Predicated region
    $region6: #{tpu_custom_call.1} parent=1 // pred_check
      _
    $region7: #{tpu_custom_call.1} parent=1 // pred_check_branch
      %20 = sbr.rel (0) target = $region9
    $region8: #{tpu_custom_call.1} parent=1 // pred_region
      %22 = dma.done [#allocation3], 32
    $region9: #{tpu_custom_call.1} parent=1 // pred_fallthru
      _
    %v23 = vld [vmem:[#allocation2] sm:$0x3]
    %v24 = vtanh.pop %v23
    %vm25 = vcmask 91136
    %26 = vst.msk [vmem:[#allocation5] sm:$0x3] %vm25, %v24
    %28 = vrot.lane.b32.xlu0 %v24, 12
    %v29 = vpop.permute.xlu0 %28
    %vm31 = vcmask 189536
    %32 = vst.msk [vmem:[#allocation5] sm:$0x3] %vm31, %v29
    // Predicated region
    $region10: #{tpu_custom_call.1} parent=1 // pred_check
      _
    $region11: #{tpu_custom_call.1} parent=1 // pred_check_branch
      %34 = sbr.rel (0) target = $region13
    $region12: #{tpu_custom_call.1} parent=1 // pred_region
      %36 = vsyncadd [#allocation4], 0
      %s38 = sshll.u32 [#allocation5], 4
      %s39 = int_to_ptr.vmem [resolvable:$true] %s38
      %s40 = sshll.u32 %s1, 4
      %s41 = int_to_ptr.hbm [resolvable:$true] %s40
      %43 = dma.vmem_to_hbm [thread:$0]  %s39, 32, %s41, [#allocation4]
    $region13: #{tpu_custom_call.1} parent=1 // pred_fallthru
      _
    // Predicated region
    $region14: #{tpu_custom_call.1} parent=1 // pred_check
      _
    $region15: #{tpu_custom_call.1} parent=1 // pred_check_branch
      %45 = sbr.rel (0) target = $region17
    $region16: #{tpu_custom_call.1} parent=1 // pred_region
      %47 = dma.done [#allocation4], 32
    $region17: #{tpu_custom_call.1} parent=1 // pred_fallthru
      _
    %48 = vsyncpa [#allocation3], 1
    %49 = vsyncpa [#allocation4], 1

</llo_original>
